<compile_context>
chip_gen: v6e
topology: v6e:2x2x1
jax: 0.10.0
libtpu: 0.0.40
codegen_flags: <defaults>
</compile_context>

<pallas_src>
import jax
import jax.numpy as jnp
from jax.experimental import pallas as pl
from jax.experimental.pallas import tpu as pltpu

IN_FEATURES = 6 * 7          # 42
HIDDEN = 512
OUT_FEATURES = 7
OUT_PADDED = 128             # lane-dense output width
MAX_TILE_B = 2048            # ~<20 MiB live per step; safe on v5e/v6e/v7x


def _round_up(n, m):
    return ((n + m - 1) // m) * m


def _default_use_bf16_elementwise():
    """bf16 VALU exists on v6e/v7x; v5e (and older / CPU interpret) stay f32."""
    try:
        kind = jax.devices()[0].device_kind.lower()
    except Exception:
        return False
    return ("v6" in kind) or ("v7" in kind)


def _mlp_kernel(x_ref, w1_ref, b1_ref, w2_ref, b2_ref, w3_ref, b3_ref, o_ref):
    # One batch tile per grid step; weights stay resident in VMEM.
    # MXU consumes bf16 operands and accumulates f32; bias-add / ReLU run on
    # the VPU in the bias dtype (bf16 on v6e/v7x, f32 on v5e).
    ew_dtype = b1_ref.dtype
    x = x_ref[...].astype(jnp.bfloat16)

    h1 = jnp.dot(x, w1_ref[...], preferred_element_type=jnp.float32)
    h1 = jnp.maximum(h1.astype(ew_dtype) + b1_ref[...], 0.0)

    h2 = jnp.dot(h1.astype(jnp.bfloat16), w2_ref[...],
                 preferred_element_type=jnp.float32)
    h2 = jnp.maximum(h2.astype(ew_dtype) + b2_ref[...], 0.0)

    logits = jnp.dot(h2.astype(jnp.bfloat16), w3_ref[...],
                     preferred_element_type=jnp.float32)
    logits = logits.astype(ew_dtype) + b3_ref[...]
    o_ref[...] = logits.astype(o_ref.dtype)


def prepare_params(params, use_bf16_elementwise=None):
    """One-time weight prep (hoisted out of the forward pass).

    Casts weights to bf16 for the MXU, zero-pads the last layer 7 -> 128, and
    reshapes biases to (1, N) in the elementwise dtype.
    """
    if use_bf16_elementwise is None:
        use_bf16_elementwise = _default_use_bf16_elementwise()
    ew = jnp.bfloat16 if use_bf16_elementwise else jnp.float32

    w1, b1, w2, b2, w3, b3 = params
    w1b = w1.astype(jnp.bfloat16)
    w2b = w2.astype(jnp.bfloat16)
    w3b = jnp.pad(w3, ((0, 0), (0, OUT_PADDED - OUT_FEATURES))).astype(jnp.bfloat16)
    b1_2d = b1.reshape(1, HIDDEN).astype(ew)
    b2_2d = b2.reshape(1, HIDDEN).astype(ew)
    b3_2d = jnp.pad(b3.reshape(1, OUT_FEATURES),
                    ((0, 0), (0, OUT_PADDED - OUT_FEATURES))).astype(ew)
    return (w1b, b1_2d, w2b, b2_2d, w3b, b3_2d)


def fir_model_forward(x, prepared_params):
    """x: (B, 6, 7) float32.  prepared_params: output of prepare_params().
    Returns logits (B, 7) float32."""
    w1b, b1_2d, w2b, b2_2d, w3b, b3_2d = prepared_params
    B = x.shape[0]
    x_flat = x.reshape(B, IN_FEATURES)                       # nn.Flatten()

    # --- batch tiling ------------------------------------------------------
    # Aim for >= 2 grid steps when B allows (so v7x's two TCs both get work),
    # capped at MAX_TILE_B and sublane-aligned (multiple of 8).
    tile_b = max(8, min(MAX_TILE_B, _round_up(pl.cdiv(B, 2), 8)))
    n_tiles = pl.cdiv(B, tile_b)
    b_pad = n_tiles * tile_b
    if b_pad != B:
        x_flat = jnp.pad(x_flat, ((0, b_pad - B), (0, 0)))

    resident = lambda shape: pl.BlockSpec(shape, lambda i: (0,) * len(shape))

    flops = 2 * b_pad * (IN_FEATURES * HIDDEN + HIDDEN * HIDDEN + HIDDEN * OUT_PADDED)
    bytes_accessed = (
        b_pad * IN_FEATURES * 4 + b_pad * OUT_PADDED * 2                      # x (f32), out (bf16)
        + (IN_FEATURES * HIDDEN + HIDDEN * HIDDEN + HIDDEN * OUT_PADDED) * 2  # bf16 W
        + (HIDDEN + HIDDEN + OUT_PADDED) * b1_2d.dtype.itemsize               # biases
    )

    out_padded = pl.pallas_call(
        _mlp_kernel,
        out_shape=jax.ShapeDtypeStruct((b_pad, OUT_PADDED), jnp.bfloat16),
        grid_spec=pltpu.PrefetchScalarGridSpec(
            num_scalar_prefetch=0,
            grid=(n_tiles,),
            in_specs=[
                pl.BlockSpec((tile_b, IN_FEATURES), lambda i: (i, 0)),   # x tile
                resident(w1b.shape),
                resident(b1_2d.shape),
                resident(w2b.shape),
                resident(b2_2d.shape),
                resident(w3b.shape),
                resident(b3_2d.shape),
            ],
            out_specs=pl.BlockSpec((tile_b, OUT_PADDED), lambda i: (i, 0)),
        ),
        compiler_params=pltpu.CompilerParams(
            dimension_semantics=("parallel",),
            vmem_limit_bytes=48 * 1024 * 1024,
        ),
        cost_estimate=pl.CostEstimate(
            flops=flops, transcendentals=0, bytes_accessed=bytes_accessed),
    )(x_flat, w1b, b1_2d, w2b, b2_2d, w3b, b3_2d)

    return out_padded[:B, :OUT_FEATURES].astype(jnp.float32)


def init_params(key):
    """Deterministic init mimicking torch.nn.Linear (uniform(-1/sqrt(fan_in), +))."""
    def linear(k, fan_in, fan_out):
        kw, kb = jax.random.split(k)
        bound = 1.0 / jnp.sqrt(fan_in)
        w = jax.random.uniform(kw, (fan_in, fan_out), jnp.float32, -bound, bound)
        b = jax.random.uniform(kb, (fan_out,), jnp.float32, -bound, bound)
        return w, b

    k1, k2, k3 = jax.random.split(key, 3)
    w1, b1 = linear(k1, IN_FEATURES, HIDDEN)
    w2, b2 = linear(k2, HIDDEN, HIDDEN)
    w3, b3 = linear(k3, HIDDEN, OUT_FEATURES)
    return (w1, b1, w2, b2, w3, b3)


def _reference_forward(x, params, ew_dtype):
    """Pure-JAX reference mirroring the kernel's bf16-MXU / f32-accumulate
    numerics and its elementwise dtype."""
    w1, b1, w2, b2, w3, b3 = params
    xf = x.reshape(x.shape[0], -1).astype(jnp.bfloat16)
    h1 = jnp.dot(xf, w1.astype(jnp.bfloat16), preferred_element_type=jnp.float32)
    h1 = jnp.maximum(h1.astype(ew_dtype) + b1.astype(ew_dtype), 0.0)
    h2 = jnp.dot(h1.astype(jnp.bfloat16), w2.astype(jnp.bfloat16),
                 preferred_element_type=jnp.float32)
    h2 = jnp.maximum(h2.astype(ew_dtype) + b2.astype(ew_dtype), 0.0)
    out = jnp.dot(h2.astype(jnp.bfloat16), w3.astype(jnp.bfloat16),
                  preferred_element_type=jnp.float32)
    out = out.astype(ew_dtype) + b3.astype(ew_dtype)
    return out.astype(jnp.float32)


if __name__ == "__main__":
    key = jax.random.PRNGKey(0)
    k_params, k_x = jax.random.split(key)

    params = init_params(k_params)
    use_bf16_ew = _default_use_bf16_elementwise()
    prepared = prepare_params(params, use_bf16_ew)      # hoisted, once per model

    x = jax.random.normal(k_x, (4, 6, 7), jnp.float32)  # batch=4, 6x7 board

    fwd = jax.jit(fir_model_forward)
    out = jax.block_until_ready(fwd(x, prepared))

    ref = _reference_forward(
        x, params, jnp.bfloat16 if use_bf16_ew else jnp.float32)

    assert out.shape == (4, 7)
    assert jnp.allclose(out, ref, atol=2e-2, rtol=2e-2), (
        f"max abs err = {float(jnp.max(jnp.abs(out - ref)))}")

    print("KERNEL_OK")
</pallas_src>

<mosaic_0001>
module attributes {stable_mosaic.version = 11 : i64} {
  func.func @_mlp_kernel(%arg0: i32, %arg1: memref<8x42xf32, #tpu.memory_space<vmem>>, %arg2: memref<42x512xbf16, #tpu.memory_space<vmem>>, %arg3: memref<1x512xf32, #tpu.memory_space<vmem>>, %arg4: memref<512x512xbf16, #tpu.memory_space<vmem>>, %arg5: memref<1x512xf32, #tpu.memory_space<vmem>>, %arg6: memref<512x128xbf16, #tpu.memory_space<vmem>>, %arg7: memref<1x128xf32, #tpu.memory_space<vmem>>, %arg8: memref<8x128xbf16, #tpu.memory_space<vmem>>) attributes {dimension_semantics = [#tpu.dimension_semantics<parallel>], iteration_bounds = array<i64: 1>, scalar_prefetch = 0 : i64, scratch_operands = 0 : i64, tpu.core_type = #tpu.core_type<tc>, window_params = [{transform_indices = @transform_0, window_bounds = array<i64: 8, 42>}, {pipeline_mode = #tpu.pipeline_mode<synchronous>, transform_indices = @transform_1, window_bounds = array<i64: 42, 512>}, {pipeline_mode = #tpu.pipeline_mode<synchronous>, transform_indices = @transform_2, window_bounds = array<i64: 1, 512>}, {pipeline_mode = #tpu.pipeline_mode<synchronous>, transform_indices = @transform_3, window_bounds = array<i64: 512, 512>}, {pipeline_mode = #tpu.pipeline_mode<synchronous>, transform_indices = @transform_4, window_bounds = array<i64: 1, 512>}, {pipeline_mode = #tpu.pipeline_mode<synchronous>, transform_indices = @transform_5, window_bounds = array<i64: 512, 128>}, {pipeline_mode = #tpu.pipeline_mode<synchronous>, transform_indices = @transform_6, window_bounds = array<i64: 1, 128>}, {transform_indices = @transform_7, window_bounds = array<i64: 8, 128>}]} {
    %c0 = arith.constant 0 : index
    %c0_0 = arith.constant 0 : index
    %0 = vector.load %arg1[%c0, %c0_0] : memref<8x42xf32, #tpu.memory_space<vmem>>, vector<8x42xf32>
    %1 = arith.truncf %0 : vector<8x42xf32> to vector<8x42xbf16>
    %c0_1 = arith.constant 0 : index
    %c0_2 = arith.constant 0 : index
    %2 = vector.load %arg2[%c0_1, %c0_2] : memref<42x512xbf16, #tpu.memory_space<vmem>>, vector<42x512xbf16>
    %cst = arith.constant dense<0.000000e+00> : vector<8x512xf32>
    %3 = tpu.matmul %1, %2, %cst {dimension_numbers = #tpu.dot_dimension_numbers<[1], [0], [0], [1], [0, 0, 1, 1], [], []>} : vector<8x42xbf16>, vector<42x512xbf16>, vector<8x512xf32> -> vector<8x512xf32>
    %c0_3 = arith.constant 0 : index
    %c0_4 = arith.constant 0 : index
    %4 = vector.load %arg3[%c0_3, %c0_4] : memref<1x512xf32, #tpu.memory_space<vmem>>, vector<1x512xf32>
    %5 = vector.broadcast %4 : vector<1x512xf32> to vector<8x512xf32>
    %6 = arith.addf %3, %5 : vector<8x512xf32>
    %cst_5 = arith.constant 0.000000e+00 : f32
    %7 = vector.broadcast %cst_5 : f32 to vector<8x512xf32>
    %8 = arith.maximumf %6, %7 : vector<8x512xf32>
    %9 = arith.truncf %8 : vector<8x512xf32> to vector<8x512xbf16>
    %c0_6 = arith.constant 0 : index
    %c0_7 = arith.constant 0 : index
    %10 = vector.load %arg4[%c0_6, %c0_7] : memref<512x512xbf16, #tpu.memory_space<vmem>>, vector<512x512xbf16>
    %cst_8 = arith.constant dense<0.000000e+00> : vector<8x512xf32>
    %11 = tpu.matmul %9, %10, %cst_8 {dimension_numbers = #tpu.dot_dimension_numbers<[1], [0], [0], [1], [0, 0, 1, 1], [], []>} : vector<8x512xbf16>, vector<512x512xbf16>, vector<8x512xf32> -> vector<8x512xf32>
    %c0_9 = arith.constant 0 : index
    %c0_10 = arith.constant 0 : index
    %12 = vector.load %arg5[%c0_9, %c0_10] : memref<1x512xf32, #tpu.memory_space<vmem>>, vector<1x512xf32>
    %13 = vector.broadcast %12 : vector<1x512xf32> to vector<8x512xf32>
    %14 = arith.addf %11, %13 : vector<8x512xf32>
    %cst_11 = arith.constant 0.000000e+00 : f32
    %15 = vector.broadcast %cst_11 : f32 to vector<8x512xf32>
    %16 = arith.maximumf %14, %15 : vector<8x512xf32>
    %17 = arith.truncf %16 : vector<8x512xf32> to vector<8x512xbf16>
    %c0_12 = arith.constant 0 : index
    %c0_13 = arith.constant 0 : index
    %18 = vector.load %arg6[%c0_12, %c0_13] : memref<512x128xbf16, #tpu.memory_space<vmem>>, vector<512x128xbf16>
    %cst_14 = arith.constant dense<0.000000e+00> : vector<8x128xf32>
    %19 = tpu.matmul %17, %18, %cst_14 {dimension_numbers = #tpu.dot_dimension_numbers<[1], [0], [0], [1], [0, 0, 1, 1], [], []>} : vector<8x512xbf16>, vector<512x128xbf16>, vector<8x128xf32> -> vector<8x128xf32>
    %c0_15 = arith.constant 0 : index
    %c0_16 = arith.constant 0 : index
    %20 = vector.load %arg7[%c0_15, %c0_16] : memref<1x128xf32, #tpu.memory_space<vmem>>, vector<1x128xf32>
    %21 = vector.broadcast %20 : vector<1x128xf32> to vector<8x128xf32>
    %22 = arith.addf %19, %21 : vector<8x128xf32>
    %23 = arith.truncf %22 : vector<8x128xf32> to vector<8x128xbf16>
    %c0_17 = arith.constant 0 : index
    %c0_18 = arith.constant 0 : index
    %24 = vector.load %arg8[%c0_17, %c0_18] : memref<8x128xbf16, #tpu.memory_space<vmem>>, vector<8x128xbf16>
    tpu.vector_store %arg8[%c0_17, %c0_18], %23 {strides = array<i32>} : memref<8x128xbf16, #tpu.memory_space<vmem>>, vector<8x128xbf16>,
    return
  }
  func.func @transform_0(%arg0: i32) -> (i32, i32) {
    %c0_i32 = arith.constant 0 : i32
    %c0_i32_0 = arith.constant 0 : i32
    return %arg0, %c0_i32 : i32, i32
  }
  func.func @transform_1(%arg0: i32) -> (i32, i32) {
    %c0_i32 = arith.constant 0 : i32
    %c0_i32_0 = arith.constant 0 : i32
    %c0_i32_1 = arith.constant 0 : i32
    return %c0_i32, %c0_i32_0 : i32, i32
  }
  func.func @transform_2(%arg0: i32) -> (i32, i32) {
    %c0_i32 = arith.constant 0 : i32
    %c0_i32_0 = arith.constant 0 : i32
    %c0_i32_1 = arith.constant 0 : i32
    return %c0_i32, %c0_i32_0 : i32, i32
  }
  func.func @transform_3(%arg0: i32) -> (i32, i32) {
    %c0_i32 = arith.constant 0 : i32
    %c0_i32_0 = arith.constant 0 : i32
    %c0_i32_1 = arith.constant 0 : i32
    return %c0_i32, %c0_i32_0 : i32, i32
  }
  func.func @transform_4(%arg0: i32) -> (i32, i32) {
    %c0_i32 = arith.constant 0 : i32
    %c0_i32_0 = arith.constant 0 : i32
    %c0_i32_1 = arith.constant 0 : i32
    return %c0_i32, %c0_i32_0 : i32, i32
  }
  func.func @transform_5(%arg0: i32) -> (i32, i32) {
    %c0_i32 = arith.constant 0 : i32
    %c0_i32_0 = arith.constant 0 : i32
    %c0_i32_1 = arith.constant 0 : i32
    return %c0_i32, %c0_i32_0 : i32, i32
  }
  func.func @transform_6(%arg0: i32) -> (i32, i32) {
    %c0_i32 = arith.constant 0 : i32
    %c0_i32_0 = arith.constant 0 : i32
    %c0_i32_1 = arith.constant 0 : i32
    return %c0_i32, %c0_i32_0 : i32, i32
  }
  func.func @transform_7(%arg0: i32) -> (i32, i32) {
    %c0_i32 = arith.constant 0 : i32
    %c0_i32_0 = arith.constant 0 : i32
    return %arg0, %c0_i32 : i32, i32
  }
}

</mosaic_0001>

<llo_original>
// kernel: fir_model_forward.1
$region0: #{fir_model_forward.1}
  #allocation0 [shape = 'u32[]', space=smem, size = 0x4, offset = 0x4, fixed_abs, tag = 'smem constant byte address 0x4 - core index']
  #allocation1 [shape = 'u32[144,128]{1,0:T(1,128)}', space=vmem, size = 0x12000, scoped, tag = 'internal scratch']
  %s0 = inlined_call_operand.vmem [shape: f32[8,42], index: 0, kind: input, shape index: {}]
  %s1 = inlined_call_operand.vmem [shape: bf16[42,512], index: 1, kind: input, shape index: {}]
  %s2 = inlined_call_operand.vmem [shape: f32[1,512], index: 2, kind: input, shape index: {}]
  %s3 = inlined_call_operand.hbm [shape: bf16[512,512], index: 3, kind: input, shape index: {}]
  %s4 = inlined_call_operand.vmem [shape: f32[1,512], index: 4, kind: input, shape index: {}]
  %s5 = inlined_call_operand.hbm [shape: bf16[512,128], index: 5, kind: input, shape index: {}]
  %s6 = inlined_call_operand.vmem [shape: f32[1,128], index: 6, kind: input, shape index: {}]
  %s7 = inlined_call_operand.vmem [shape: bf16[8,128], index: 7, kind: output, shape index: {}]
  %s8 = sld [smem:[#allocation0]]
  $region46: #{fir_model_forward.1} parent=0
    _
  %s10 = ssub.s32 1, %s8
  %s11 = scalar_select 0, %s10, %s8
  $region1: #{fir_model_forward.1} parent=0
    #allocation2 [shape = 'u8[524288]{0}', space=vmem, size = 0x80000, scoped, tag = 'input window, operand 3, single buffered']
    #allocation3 [shape = 's32[1]{0}', space=sflag, size = 0x4, scoped, tag = 'scoped memory for fir_model_forward.1']
    #allocation4 [shape = 'u8[131072]{0}', space=vmem, size = 0x20000, scoped, tag = 'input window, operand 5, single buffered']
    #allocation5 [shape = 's32[1]{0}', space=sflag, size = 0x4, scoped, tag = 'scoped memory for fir_model_forward.1']
    %12 = vsyncpa [#allocation3], 0
    %13 = vsyncpa [#allocation5], 0
    // Predicated region
    $region2: #{fir_model_forward.1} parent=1 // pred_check
      _
    $region3: #{fir_model_forward.1} parent=1 // pred_check_branch
      %15 = sbr.rel (0) target = $region5
    $region4: #{fir_model_forward.1} parent=1 // pred_region
      _
    $region5: #{fir_model_forward.1} parent=1 // pred_fallthru
      _
    // Predicated region
    $region6: #{fir_model_forward.1} parent=1 // pred_check
      _
    $region7: #{fir_model_forward.1} parent=1 // pred_check_branch
      %17 = sbr.rel (0) target = $region9
    $region8: #{fir_model_forward.1} parent=1 // pred_region
      _
    $region9: #{fir_model_forward.1} parent=1 // pred_fallthru
      _
    // Predicated region
    $region10: #{fir_model_forward.1} parent=1 // pred_check
      _
    $region11: #{fir_model_forward.1} parent=1 // pred_check_branch
      %19 = sbr.rel (0) target = $region13
    $region12: #{fir_model_forward.1} parent=1 // pred_region
      _
    $region13: #{fir_model_forward.1} parent=1 // pred_fallthru
      _
    // Predicated region
    $region14: #{fir_model_forward.1} parent=1 // pred_check
      _
    $region15: #{fir_model_forward.1} parent=1 // pred_check_branch
      %21 = sbr.rel (0) target = $region17
    $region16: #{fir_model_forward.1} parent=1 // pred_region
      %s23 = ssub.s32 16384, 16384
      %24 = vsyncadd [#allocation3], %s23
      %s25 = sshll.u32 [#allocation2], 4
      %s26 = int_to_ptr.vmem [resolvable:$true] %s25
      %31 = dma.hbm_to_vmem [thread:$0]  %s3, 16384, %s26, [#allocation3], 256, 256, 16
    $region17: #{fir_model_forward.1} parent=1 // pred_fallthru
      _
    // Predicated region
    $region18: #{fir_model_forward.1} parent=1 // pred_check
      _
    $region19: #{fir_model_forward.1} parent=1 // pred_check_branch
      %33 = sbr.rel (0) target = $region21
    $region20: #{fir_model_forward.1} parent=1 // pred_region
      _
    $region21: #{fir_model_forward.1} parent=1 // pred_fallthru
      _
    // Predicated region
    $region22: #{fir_model_forward.1} parent=1 // pred_check
      _
    $region23: #{fir_model_forward.1} parent=1 // pred_check_branch
      %35 = sbr.rel (0) target = $region25
    $region24: #{fir_model_forward.1} parent=1 // pred_region
      %s37 = ssub.s32 4096, 4096
      %38 = vsyncadd [#allocation5], %s37
      %s39 = sshll.u32 [#allocation4], 4
      %s40 = int_to_ptr.vmem [resolvable:$true] %s39
      %45 = dma.hbm_to_vmem [thread:$0]  %s5, 4096, %s40, [#allocation5], 64, 64, 4
    $region25: #{fir_model_forward.1} parent=1 // pred_fallthru
      _
    // Predicated region
    $region26: #{fir_model_forward.1} parent=1 // pred_check
      _
    $region27: #{fir_model_forward.1} parent=1 // pred_check_branch
      %47 = sbr.rel (0) target = $region29
    $region28: #{fir_model_forward.1} parent=1 // pred_region
      _
    $region29: #{fir_model_forward.1} parent=1 // pred_fallthru
      _
    // Predicated region
    $region30: #{fir_model_forward.1} parent=1 // pred_check
      _
    $region31: #{fir_model_forward.1} parent=1 // pred_check_branch
      %49 = sbr.rel (0) target = $region33
    $region32: #{fir_model_forward.1} parent=1 // pred_region
      %50 = dma.done [#allocation3], 16384
    $region33: #{fir_model_forward.1} parent=1 // pred_fallthru
      _
    // Predicated region
    $region34: #{fir_model_forward.1} parent=1 // pred_check
      _
    $region35: #{fir_model_forward.1} parent=1 // pred_check_branch
      %52 = sbr.rel (0) target = $region37
    $region36: #{fir_model_forward.1} parent=1 // pred_region
      %53 = dma.done [#allocation5], 4096
    $region37: #{fir_model_forward.1} parent=1 // pred_fallthru
      _
    %v55 = vld [vmem:[%s0] sm:$0xff]
    %v56 = vpack.c.bf16 %v55, %v55
    %v57 = vld [vmem:[%s1] sm:$0xff]
    %v58 = vld [vmem:[%s1 + $0x8] sm:$0xff]
    %v59 = vld [vmem:[%s1 + $0x10] sm:$0xff]
    %v60 = vld [vmem:[%s1 + $0x18] sm:$0xff]
    %v61 = vld [vmem:[%s1 + $0x20] sm:$0xff]
    %v62 = vld [vmem:[%s1 + $0x28] sm:$0xff]
    %v63 = vld [vmem:[%s1 + $0x30] sm:$0xff]
    %v64 = vld [vmem:[%s1 + $0x38] sm:$0xff]
    %v65 = vld [vmem:[%s1 + $0x40] sm:$0xff]
    %v66 = vld [vmem:[%s1 + $0x48] sm:$0xff]
    %v67 = vld [vmem:[%s1 + $0x50] sm:$0x11]
    %v68 = vld [vmem:[%s1 + $0x58] sm:$0x11]
    %v69 = vld [vmem:[%s2] sm:$0xf]
    %v71 = vlaneseq
    %v72 = vshrl.u32 %v71, 7
    %v73 = vsub.s32 0, %v72
    %v74 = vrot.slane %v69, %v73
    %v75 = vlaneseq
    %v76 = vshrl.u32 %v75, 7
    %v77 = vsub.s32 1, %v76
    %v78 = vrot.slane %v69, %v77
    %v79 = vlaneseq
    %v80 = vshrl.u32 %v79, 7
    %v81 = vsub.s32 2, %v80
    %v82 = vrot.slane %v69, %v81
    %v83 = vlaneseq
    %v84 = vshrl.u32 %v83, 7
    %v85 = vsub.s32 3, %v84
    %v86 = vrot.slane %v69, %v85
    %v103 = vunpack.c.l.b16 %v57
    %v104 = vunpack.c.h.b16 %v57
    %v105 = vunpack.c.l.b16 %v58
    %v106 = vunpack.c.h.b16 %v58
    %v107 = vunpack.c.l.b16 %v59
    %v108 = vunpack.c.h.b16 %v59
    %v109 = vunpack.c.l.b16 %v60
    %v110 = vunpack.c.h.b16 %v60
    %v111 = vunpack.c.l.b16 %v61
    %v112 = vunpack.c.h.b16 %v61
    %v113 = vunpack.c.l.b16 %v62
    %v114 = vunpack.c.h.b16 %v62
    %v115 = vunpack.c.l.b16 %v63
    %v116 = vunpack.c.h.b16 %v63
    %v117 = vunpack.c.l.b16 %v64
    %v118 = vunpack.c.h.b16 %v64
    %v119 = vunpack.c.l.b16 %v65
    %v120 = vunpack.c.h.b16 %v65
    %v121 = vunpack.c.l.b16 %v66
    %v122 = vunpack.c.h.b16 %v66
    %v123 = vunpack.c.l.b16 %v67
    %v124 = vunpack.c.h.b16 %v67
    %v125 = vunpack.c.l.b16 %v68
    %v126 = vunpack.c.h.b16 %v68
    %v127 = vpack.c.b16 %v107, %v103
    %v128 = vpack.c.b16 %v108, %v104
    %v129 = vpack.c.b16 %v109, %v105
    %v130 = vpack.c.b16 %v110, %v106
    %v131 = vpack.c.b16 %v115, %v111
    %v132 = vpack.c.b16 %v116, %v112
    %v133 = vpack.c.b16 %v117, %v113
    %v134 = vpack.c.b16 %v118, %v114
    %v135 = vpack.c.b16 %v123, %v119
    %v136 = vpack.c.b16 %v124, %v120
    %v137 = vpack.c.b16 %v125, %v121
    %v138 = vpack.c.b16 %v126, %v122
    %vm147 = vcmask 343040
    %v149 = vsel %vm147, %v56, 0
    %vm151 = vcmask 1044480
    %v153 = vsel %vm151, %v135, 0
    %v156 = vsel %vm151, %v136, 0
    %v159 = vsel %vm151, %v137, 0
    %v162 = vsel %vm151, %v138, 0
    %164 = vmatprep.subr.bf16.mxu0 0
    %165 = vmatpush1.bf16.msra.mxu0 0
    %166 = vmatprep.subr.bf16.mxu0 0
    %167 = vmatpush1.bf16.msra.mxu0 0
    %168 = vmatprep.subr.bf16.mxu0 0
    %169 = vmatpush1.bf16.msra.mxu0 0
    %170 = vmatprep.subr.bf16.mxu0 0
    %171 = vmatpush1.bf16.msra.mxu0 0
    %172 = vmatprep.subr.bf16.mxu0 0
    %173 = vmatpush1.bf16.msra.mxu0 0
    %174 = vmatprep.subr.bf16.mxu0 %v156
    %175 = vmatpush1.bf16.msra.mxu0 %v153
    %176 = vmatprep.subr.bf16.mxu0 %v132
    %177 = vmatpush1.bf16.msra.mxu0 %v131
    %178 = vmatprep.subr.bf16.mxu0 %v128
    %179 = vmatpush1.bf16.msra.mxu0 %v127
    %180 = vmatprep.subr.bf16.mxu0 0
    %181 = vmatpush2.bf16.msra.mxu0 0
    %182 = vmatprep.subr.bf16.mxu0 0
    %183 = vmatpush2.bf16.msra.mxu0 0
    %184 = vmatprep.subr.bf16.mxu0 0
    %185 = vmatpush2.bf16.msra.mxu0 0
    %186 = vmatprep.subr.bf16.mxu0 0
    %187 = vmatpush2.bf16.msra.mxu0 0
    %188 = vmatprep.subr.bf16.mxu0 0
    %189 = vmatpush2.bf16.msra.mxu0 0
    %190 = vmatprep.subr.bf16.mxu0 0
    %191 = vmatpush2.bf16.msra.mxu0 0
    %192 = vmatprep.subr.bf16.mxu0 0
    %193 = vmatpush2.bf16.msra.mxu0 0
    %194 = vmatprep.subr.bf16.mxu0 0
    %195 = vmatpush2.bf16.msra.mxu0 0
    %196 = vmatprep.mubr.bf16.mxu0 0
    %197 = vmatmul.mubr.bf16.gmra.mxu0 %v149
    %v198 = vpop.f32.mrf.mxu0
    %v199 = vadd.f32 %v74, %v198
    %v200 = vpop.f32.mrf.mxu0
    %v201 = vadd.f32 %v78, %v200
    %v202 = vpop.f32.mrf.mxu0
    %v203 = vpop.f32.mrf.mxu0
    %204 = vdwg.mxu0
    %205 = vmatprep.subr.bf16.mxu0 0
    %206 = vmatpush1.bf16.msra.mxu0 0
    %207 = vmatprep.subr.bf16.mxu0 0
    %208 = vmatpush1.bf16.msra.mxu0 0
    %209 = vmatprep.subr.bf16.mxu0 0
    %210 = vmatpush1.bf16.msra.mxu0 0
    %211 = vmatprep.subr.bf16.mxu0 0
    %212 = vmatpush1.bf16.msra.mxu0 0
    %213 = vmatprep.subr.bf16.mxu0 0
    %214 = vmatpush1.bf16.msra.mxu0 0
    %215 = vmatprep.subr.bf16.mxu0 %v162
    %216 = vmatpush1.bf16.msra.mxu0 %v159
    %217 = vmatprep.subr.bf16.mxu0 %v134
    %218 = vmatpush1.bf16.msra.mxu0 %v133
    %219 = vmatprep.subr.bf16.mxu0 %v130
    %220 = vmatpush1.bf16.msra.mxu0 %v129
    %221 = vmatprep.subr.bf16.mxu0 0
    %222 = vmatpush2.bf16.msra.mxu0 0
    %223 = vmatprep.subr.bf16.mxu0 0
    %224 = vmatpush2.bf16.msra.mxu0 0
    %225 = vmatprep.subr.bf16.mxu0 0
    %226 = vmatpush2.bf16.msra.mxu0 0
    %227 = vmatprep.subr.bf16.mxu0 0
    %228 = vmatpush2.bf16.msra.mxu0 0
    %229 = vmatprep.subr.bf16.mxu0 0
    %230 = vmatpush2.bf16.msra.mxu0 0
    %231 = vmatprep.subr.bf16.mxu0 0
    %232 = vmatpush2.bf16.msra.mxu0 0
    %233 = vmatprep.subr.bf16.mxu0 0
    %234 = vmatpush2.bf16.msra.mxu0 0
    %235 = vmatprep.subr.bf16.mxu0 0
    %236 = vmatpush2.bf16.msra.mxu0 0
    %237 = vmatprep.mubr.bf16.mxu0 0
    %238 = vmatmul.mubr.bf16.gmra.mxu0 %v149
    %v239 = vpop.f32.mrf.mxu0
    %v240 = vadd.f32 %v82, %v239
    %v241 = vpop.f32.mrf.mxu0
    %v242 = vadd.f32 %v86, %v241
    %v243 = vpop.f32.mrf.mxu0
    %v244 = vpop.f32.mrf.mxu0
    %245 = vdwg.mxu0
    %v246 = vmax.f32 %v199, 0.0
    %v247 = vmax.f32 %v201, 0.0
    %v248 = vmax.f32 %v240, 0.0
    %v249 = vmax.f32 %v242, 0.0
    %v250 = vpack.c.bf16 %v246, %v246
    %v251 = vpack.c.bf16 %v247, %v247
    %v252 = vpack.c.bf16 %v248, %v248
    %v253 = vpack.c.bf16 %v249, %v249
    %v254 = vld [vmem:[#allocation2] sm:$0xff]
    %v255 = vld [vmem:[#allocation2 + $0x8] sm:$0xff]
    %v256 = vld [vmem:[#allocation2 + $0x10] sm:$0xff]
    %v257 = vld [vmem:[#allocation2 + $0x18] sm:$0xff]
    %v258 = vld [vmem:[#allocation2 + $0x20] sm:$0xff]
    %v259 = vld [vmem:[#allocation2 + $0x28] sm:$0xff]
    %v260 = vld [vmem:[#allocation2 + $0x30] sm:$0xff]
    %v261 = vld [vmem:[#allocation2 + $0x38] sm:$0xff]
    %v262 = vld [vmem:[#allocation2 + $0x40] sm:$0xff]
    %v263 = vld [vmem:[#allocation2 + $0x48] sm:$0xff]
    %v264 = vld [vmem:[#allocation2 + $0x50] sm:$0xff]
    %v265 = vld [vmem:[#allocation2 + $0x58] sm:$0xff]
    %v266 = vld [vmem:[#allocation2 + $0x60] sm:$0xff]
    %v267 = vld [vmem:[#allocation2 + $0x68] sm:$0xff]
    %v268 = vld [vmem:[#allocation2 + $0x70] sm:$0xff]
    %v269 = vld [vmem:[#allocation2 + $0x78] sm:$0xff]
    %v270 = vld [vmem:[#allocation2 + $0x80] sm:$0xff]
    %v271 = vld [vmem:[#allocation2 + $0x88] sm:$0xff]
    %v272 = vld [vmem:[#allocation2 + $0x90] sm:$0xff]
    %v273 = vld [vmem:[#allocation2 + $0x98] sm:$0xff]
    %v274 = vld [vmem:[#allocation2 + $0xa0] sm:$0xff]
    %v275 = vld [vmem:[#allocation2 + $0xa8] sm:$0xff]
    %v276 = vld [vmem:[#allocation2 + $0xb0] sm:$0xff]
    %v277 = vld [vmem:[#allocation2 + $0xb8] sm:$0xff]
    %v278 = vld [vmem:[#allocation2 + $0xc0] sm:$0xff]
    %v279 = vld [vmem:[#allocation2 + $0xc8] sm:$0xff]
    %v280 = vld [vmem:[#allocation2 + $0xd0] sm:$0xff]
    %v281 = vld [vmem:[#allocation2 + $0xd8] sm:$0xff]
    %v282 = vld [vmem:[#allocation2 + $0xe0] sm:$0xff]
    %v283 = vld [vmem:[#allocation2 + $0xe8] sm:$0xff]
    %v284 = vld [vmem:[#allocation2 + $0xf0] sm:$0xff]
    %v285 = vld [vmem:[#allocation2 + $0xf8] sm:$0xff]
    %v286 = vld [vmem:[#allocation2 + $0x100] sm:$0xff]
    %v287 = vld [vmem:[#allocation2 + $0x108] sm:$0xff]
    %v288 = vld [vmem:[#allocation2 + $0x110] sm:$0xff]
    %v289 = vld [vmem:[#allocation2 + $0x118] sm:$0xff]
    %v290 = vld [vmem:[#allocation2 + $0x120] sm:$0xff]
    %v291 = vld [vmem:[#allocation2 + $0x128] sm:$0xff]
    %v292 = vld [vmem:[#allocation2 + $0x130] sm:$0xff]
    %v293 = vld [vmem:[#allocation2 + $0x138] sm:$0xff]
    %v294 = vld [vmem:[#allocation2 + $0x140] sm:$0xff]
    %v295 = vld [vmem:[#allocation2 + $0x148] sm:$0xff]
    %v296 = vld [vmem:[#allocation2 + $0x150] sm:$0xff]
    %v297 = vld [vmem:[#allocation2 + $0x158] sm:$0xff]
    %v298 = vld [vmem:[#allocation2 + $0x160] sm:$0xff]
    %v299 = vld [vmem:[#allocation2 + $0x168] sm:$0xff]
    %v300 = vld [vmem:[#allocation2 + $0x170] sm:$0xff]
    %v301 = vld [vmem:[#allocation2 + $0x178] sm:$0xff]
    %v302 = vld [vmem:[#allocation2 + $0x180] sm:$0xff]
    %v303 = vld [vmem:[#allocation2 + $0x188] sm:$0xff]
    %v304 = vld [vmem:[#allocation2 + $0x190] sm:$0xff]
    %v305 = vld [vmem:[#allocation2 + $0x198] sm:$0xff]
    %v306 = vld [vmem:[#allocation2 + $0x1a0] sm:$0xff]
    %v307 = vld [vmem:[#allocation2 + $0x1a8] sm:$0xff]
    %v308 = vld [vmem:[#allocation2 + $0x1b0] sm:$0xff]
    %v309 = vld [vmem:[#allocation2 + $0x1b8] sm:$0xff]
    %v310 = vld [vmem:[#allocation2 + $0x1c0] sm:$0xff]
    %v311 = vld [vmem:[#allocation2 + $0x1c8] sm:$0xff]
    %v312 = vld [vmem:[#allocation2 + $0x1d0] sm:$0xff]
    %v313 = vld [vmem:[#allocation2 + $0x1d8] sm:$0xff]
    %v314 = vld [vmem:[#allocation2 + $0x1e0] sm:$0xff]
    %v315 = vld [vmem:[#allocation2 + $0x1e8] sm:$0xff]
    %v316 = vld [vmem:[#allocation2 + $0x1f0] sm:$0xff]
    %v317 = vld [vmem:[#allocation2 + $0x1f8] sm:$0xff]
    %v318 = vld [vmem:[#allocation2 + $0x200] sm:$0xff]
    %v319 = vld [vmem:[#allocation2 + $0x208] sm:$0xff]
    %v320 = vld [vmem:[#allocation2 + $0x210] sm:$0xff]
    %v321 = vld [vmem:[#allocation2 + $0x218] sm:$0xff]
    %v322 = vld [vmem:[#allocation2 + $0x220] sm:$0xff]
    %v323 = vld [vmem:[#allocation2 + $0x228] sm:$0xff]
    %v324 = vld [vmem:[#allocation2 + $0x230] sm:$0xff]
    %v325 = vld [vmem:[#allocation2 + $0x238] sm:$0xff]
    %v326 = vld [vmem:[#allocation2 + $0x240] sm:$0xff]
    %v327 = vld [vmem:[#allocation2 + $0x248] sm:$0xff]
    %v328 = vld [vmem:[#allocation2 + $0x250] sm:$0xff]
    %v329 = vld [vmem:[#allocation2 + $0x258] sm:$0xff]
    %v330 = vld [vmem:[#allocation2 + $0x260] sm:$0xff]
    %v331 = vld [vmem:[#allocation2 + $0x268] sm:$0xff]
    %v332 = vld [vmem:[#allocation2 + $0x270] sm:$0xff]
    %v333 = vld [vmem:[#allocation2 + $0x278] sm:$0xff]
    %v334 = vld [vmem:[#allocation2 + $0x280] sm:$0xff]
    %v335 = vld [vmem:[#allocation2 + $0x288] sm:$0xff]
    %v336 = vld [vmem:[#allocation2 + $0x290] sm:$0xff]
    %v337 = vld [vmem:[#allocation2 + $0x298] sm:$0xff]
    %v338 = vld [vmem:[#allocation2 + $0x2a0] sm:$0xff]
    %v339 = vld [vmem:[#allocation2 + $0x2a8] sm:$0xff]
    %v340 = vld [vmem:[#allocation2 + $0x2b0] sm:$0xff]
    %v341 = vld [vmem:[#allocation2 + $0x2b8] sm:$0xff]
    %v342 = vld [vmem:[#allocation2 + $0x2c0] sm:$0xff]
    %v343 = vld [vmem:[#allocation2 + $0x2c8] sm:$0xff]
    %v344 = vld [vmem:[#allocation2 + $0x2d0] sm:$0xff]
    %v345 = vld [vmem:[#allocation2 + $0x2d8] sm:$0xff]
    %v346 = vld [vmem:[#allocation2 + $0x2e0] sm:$0xff]
    %v347 = vld [vmem:[#allocation2 + $0x2e8] sm:$0xff]
    %v348 = vld [vmem:[#allocation2 + $0x2f0] sm:$0xff]
    %v349 = vld [vmem:[#allocation2 + $0x2f8] sm:$0xff]
    %v350 = vld [vmem:[#allocation2 + $0x300] sm:$0xff]
    %v351 = vld [vmem:[#allocation2 + $0x308] sm:$0xff]
    %v352 = vld [vmem:[#allocation2 + $0x310] sm:$0xff]
    %v353 = vld [vmem:[#allocation2 + $0x318] sm:$0xff]
    %v354 = vld [vmem:[#allocation2 + $0x320] sm:$0xff]
    %v355 = vld [vmem:[#allocation2 + $0x328] sm:$0xff]
    %v356 = vld [vmem:[#allocation2 + $0x330] sm:$0xff]
    %v357 = vld [vmem:[#allocation2 + $0x338] sm:$0xff]
    %v358 = vld [vmem:[#allocation2 + $0x340] sm:$0xff]
    %v359 = vld [vmem:[#allocation2 + $0x348] sm:$0xff]
    %v360 = vld [vmem:[#allocation2 + $0x350] sm:$0xff]
    %v361 = vld [vmem:[#allocation2 + $0x358] sm:$0xff]
    %v362 = vld [vmem:[#allocation2 + $0x360] sm:$0xff]
    %v363 = vld [vmem:[#allocation2 + $0x368] sm:$0xff]
    %v364 = vld [vmem:[#allocation2 + $0x370] sm:$0xff]
    %v365 = vld [vmem:[#allocation2 + $0x378] sm:$0xff]
    %v366 = vld [vmem:[#allocation2 + $0x380] sm:$0xff]
    %v367 = vld [vmem:[#allocation2 + $0x388] sm:$0xff]
    %v368 = vld [vmem:[#allocation2 + $0x390] sm:$0xff]
    %v369 = vld [vmem:[#allocation2 + $0x398] sm:$0xff]
    %v370 = vld [vmem:[#allocation2 + $0x3a0] sm:$0xff]
    %v371 = vld [vmem:[#allocation2 + $0x3a8] sm:$0xff]
    %v372 = vld [vmem:[#allocation2 + $0x3b0] sm:$0xff]
    %v373 = vld [vmem:[#allocation2 + $0x3b8] sm:$0xff]
    %v374 = vld [vmem:[#allocation2 + $0x3c0] sm:$0xff]
    %v375 = vld [vmem:[#allocation2 + $0x3c8] sm:$0xff]
    %v376 = vld [vmem:[#allocation2 + $0x3d0] sm:$0xff]
    %v377 = vld [vmem:[#allocation2 + $0x3d8] sm:$0xff]
    %v378 = vld [vmem:[#allocation2 + $0x3e0] sm:$0xff]
    %v379 = vld [vmem:[#allocation2 + $0x3e8] sm:$0xff]
    %v380 = vld [vmem:[#allocation2 + $0x3f0] sm:$0xff]
    %v381 = vld [vmem:[#allocation2 + $0x3f8] sm:$0xff]
    %v382 = vld [vmem:[%s4] sm:$0xf]
    %v384 = vlaneseq
    %v385 = vshrl.u32 %v384, 7
    %v386 = vsub.s32 0, %v385
    %v387 = vrot.slane %v382, %v386
    %v388 = vlaneseq
    %v389 = vshrl.u32 %v388, 7
    %v390 = vsub.s32 1, %v389
    %v391 = vrot.slane %v382, %v390
    %v392 = vlaneseq
    %v393 = vshrl.u32 %v392, 7
    %v394 = vsub.s32 2, %v393
    %v395 = vrot.slane %v382, %v394
    %v396 = vlaneseq
    %v397 = vshrl.u32 %v396, 7
    %v398 = vsub.s32 3, %v397
    %v399 = vrot.slane %v382, %v398
    %v532 = vunpack.c.l.b16 %v254
    %v533 = vunpack.c.h.b16 %v254
    %v534 = vunpack.c.l.b16 %v255
    %v535 = vunpack.c.h.b16 %v255
    %v536 = vunpack.c.l.b16 %v256
    %v537 = vunpack.c.h.b16 %v256
    %v538 = vunpack.c.l.b16 %v257
    %v539 = vunpack.c.h.b16 %v257
    %v540 = vunpack.c.l.b16 %v258
    %v541 = vunpack.c.h.b16 %v258
    %v542 = vunpack.c.l.b16 %v259
    %v543 = vunpack.c.h.b16 %v259
    %v544 = vunpack.c.l.b16 %v260
    %v545 = vunpack.c.h.b16 %v260
    %v546 = vunpack.c.l.b16 %v261
    %v547 = vunpack.c.h.b16 %v261
    %v548 = vunpack.c.l.b16 %v262
    %v549 = vunpack.c.h.b16 %v262
    %v550 = vunpack.c.l.b16 %v263
    %v551 = vunpack.c.h.b16 %v263
    %v552 = vunpack.c.l.b16 %v264
    %v553 = vunpack.c.h.b16 %v264
    %v554 = vunpack.c.l.b16 %v265
    %v555 = vunpack.c.h.b16 %v265
    %v556 = vunpack.c.l.b16 %v266
    %v557 = vunpack.c.h.b16 %v266
    %v558 = vunpack.c.l.b16 %v267
    %v559 = vunpack.c.h.b16 %v267
    %v560 = vunpack.c.l.b16 %v268
    %v561 = vunpack.c.h.b16 %v268
    %v562 = vunpack.c.l.b16 %v269
    %v563 = vunpack.c.h.b16 %v269
    %v564 = vunpack.c.l.b16 %v270
    %v565 = vunpack.c.h.b16 %v270
    %v566 = vunpack.c.l.b16 %v271
    %v567 = vunpack.c.h.b16 %v271
    %v568 = vunpack.c.l.b16 %v272
    %v569 = vunpack.c.h.b16 %v272
    %v570 = vunpack.c.l.b16 %v273
    %v571 = vunpack.c.h.b16 %v273
    %v572 = vunpack.c.l.b16 %v274
    %v573 = vunpack.c.h.b16 %v274
    %v574 = vunpack.c.l.b16 %v275
    %v575 = vunpack.c.h.b16 %v275
    %v576 = vunpack.c.l.b16 %v276
    %v577 = vunpack.c.h.b16 %v276
    %v578 = vunpack.c.l.b16 %v277
    %v579 = vunpack.c.h.b16 %v277
    %v580 = vunpack.c.l.b16 %v278
    %v581 = vunpack.c.h.b16 %v278
    %v582 = vunpack.c.l.b16 %v279
    %v583 = vunpack.c.h.b16 %v279
    %v584 = vunpack.c.l.b16 %v280
    %v585 = vunpack.c.h.b16 %v280
    %v586 = vunpack.c.l.b16 %v281
    %v587 = vunpack.c.h.b16 %v281
    %v588 = vunpack.c.l.b16 %v282
    %v589 = vunpack.c.h.b16 %v282
    %v590 = vunpack.c.l.b16 %v283
    %v591 = vunpack.c.h.b16 %v283
    %v592 = vunpack.c.l.b16 %v284
    %v593 = vunpack.c.h.b16 %v284
    %v594 = vunpack.c.l.b16 %v285
    %v595 = vunpack.c.h.b16 %v285
    %v596 = vunpack.c.l.b16 %v286
    %v597 = vunpack.c.h.b16 %v286
    %v598 = vunpack.c.l.b16 %v287
    %v599 = vunpack.c.h.b16 %v287
    %v600 = vunpack.c.l.b16 %v288
    %v601 = vunpack.c.h.b16 %v288
    %v602 = vunpack.c.l.b16 %v289
    %v603 = vunpack.c.h.b16 %v289
    %v604 = vunpack.c.l.b16 %v290
    %v605 = vunpack.c.h.b16 %v290
    %v606 = vunpack.c.l.b16 %v291
    %v607 = vunpack.c.h.b16 %v291
    %v608 = vunpack.c.l.b16 %v292
    %v609 = vunpack.c.h.b16 %v292
    %v610 = vunpack.c.l.b16 %v293
    %v611 = vunpack.c.h.b16 %v293
    %v612 = vunpack.c.l.b16 %v294
    %v613 = vunpack.c.h.b16 %v294
    %v614 = vunpack.c.l.b16 %v295
    %v615 = vunpack.c.h.b16 %v295
    %v616 = vunpack.c.l.b16 %v296
    %v617 = vunpack.c.h.b16 %v296
    %v618 = vunpack.c.l.b16 %v297
    %v619 = vunpack.c.h.b16 %v297
    %v620 = vunpack.c.l.b16 %v298
    %v621 = vunpack.c.h.b16 %v298
    %v622 = vunpack.c.l.b16 %v299
    %v623 = vunpack.c.h.b16 %v299
    %v624 = vunpack.c.l.b16 %v300
    %v625 = vunpack.c.h.b16 %v300
    %v626 = vunpack.c.l.b16 %v301
    %v627 = vunpack.c.h.b16 %v301
    %v628 = vunpack.c.l.b16 %v302
    %v629 = vunpack.c.h.b16 %v302
    %v630 = vunpack.c.l.b16 %v303
    %v631 = vunpack.c.h.b16 %v303
    %v632 = vunpack.c.l.b16 %v304
    %v633 = vunpack.c.h.b16 %v304
    %v634 = vunpack.c.l.b16 %v305
    %v635 = vunpack.c.h.b16 %v305
    %v636 = vunpack.c.l.b16 %v306
    %v637 = vunpack.c.h.b16 %v306
    %v638 = vunpack.c.l.b16 %v307
    %v639 = vunpack.c.h.b16 %v307
    %v640 = vunpack.c.l.b16 %v308
    %v641 = vunpack.c.h.b16 %v308
    %v642 = vunpack.c.l.b16 %v309
    %v643 = vunpack.c.h.b16 %v309
    %v644 = vunpack.c.l.b16 %v310
    %v645 = vunpack.c.h.b16 %v310
    %v646 = vunpack.c.l.b16 %v311
    %v647 = vunpack.c.h.b16 %v311
    %v648 = vunpack.c.l.b16 %v312
    %v649 = vunpack.c.h.b16 %v312
    %v650 = vunpack.c.l.b16 %v313
    %v651 = vunpack.c.h.b16 %v313
    %v652 = vunpack.c.l.b16 %v314
    %v653 = vunpack.c.h.b16 %v314
    %v654 = vunpack.c.l.b16 %v315
    %v655 = vunpack.c.h.b16 %v315
    %v656 = vunpack.c.l.b16 %v316
    %v657 = vunpack.c.h.b16 %v316
    %v658 = vunpack.c.l.b16 %v317
    %v659 = vunpack.c.h.b16 %v317
    %v660 = vunpack.c.l.b16 %v318
    %v661 = vunpack.c.h.b16 %v318
    %v662 = vunpack.c.l.b16 %v319
    %v663 = vunpack.c.h.b16 %v319
    %v664 = vunpack.c.l.b16 %v320
    %v665 = vunpack.c.h.b16 %v320
    %v666 = vunpack.c.l.b16 %v321
    %v667 = vunpack.c.h.b16 %v321
    %v668 = vunpack.c.l.b16 %v322
    %v669 = vunpack.c.h.b16 %v322
    %v670 = vunpack.c.l.b16 %v323
    %v671 = vunpack.c.h.b16 %v323
    %v672 = vunpack.c.l.b16 %v324
    %v673 = vunpack.c.h.b16 %v324
    %v674 = vunpack.c.l.b16 %v325
    %v675 = vunpack.c.h.b16 %v325
    %v676 = vunpack.c.l.b16 %v326
    %v677 = vunpack.c.h.b16 %v326
    %v678 = vunpack.c.l.b16 %v327
    %v679 = vunpack.c.h.b16 %v327
    %v680 = vunpack.c.l.b16 %v328
    %v681 = vunpack.c.h.b16 %v328
    %v682 = vunpack.c.l.b16 %v329
    %v683 = vunpack.c.h.b16 %v329
    %v684 = vunpack.c.l.b16 %v330
    %v685 = vunpack.c.h.b16 %v330
    %v686 = vunpack.c.l.b16 %v331
    %v687 = vunpack.c.h.b16 %v331
    %v688 = vunpack.c.l.b16 %v332
    %v689 = vunpack.c.h.b16 %v332
    %v690 = vunpack.c.l.b16 %v333
    %v691 = vunpack.c.h.b16 %v333
    %v692 = vunpack.c.l.b16 %v334
    %v693 = vunpack.c.h.b16 %v334
    %v694 = vunpack.c.l.b16 %v335
    %v695 = vunpack.c.h.b16 %v335
    %v696 = vunpack.c.l.b16 %v336
    %v697 = vunpack.c.h.b16 %v336
    %v698 = vunpack.c.l.b16 %v337
    %v699 = vunpack.c.h.b16 %v337
    %v700 = vunpack.c.l.b16 %v338
    %v701 = vunpack.c.h.b16 %v338
    %v702 = vunpack.c.l.b16 %v339
    %v703 = vunpack.c.h.b16 %v339
    %v704 = vunpack.c.l.b16 %v340
    %v705 = vunpack.c.h.b16 %v340
    %v706 = vunpack.c.l.b16 %v341
    %v707 = vunpack.c.h.b16 %v341
    %v708 = vunpack.c.l.b16 %v342
    %v709 = vunpack.c.h.b16 %v342
    %v710 = vunpack.c.l.b16 %v343
    %v711 = vunpack.c.h.b16 %v343
    %v712 = vunpack.c.l.b16 %v344
    %v713 = vunpack.c.h.b16 %v344
    %v714 = vunpack.c.l.b16 %v345
    %v715 = vunpack.c.h.b16 %v345
    %v716 = vunpack.c.l.b16 %v346
    %v717 = vunpack.c.h.b16 %v346
    %v718 = vunpack.c.l.b16 %v347
    %v719 = vunpack.c.h.b16 %v347
    %v720 = vunpack.c.l.b16 %v348
    %v721 = vunpack.c.h.b16 %v348
    %v722 = vunpack.c.l.b16 %v349
    %v723 = vunpack.c.h.b16 %v349
    %v724 = vunpack.c.l.b16 %v350
    %v725 = vunpack.c.h.b16 %v350
    %v726 = vunpack.c.l.b16 %v351
    %v727 = vunpack.c.h.b16 %v351
    %v728 = vunpack.c.l.b16 %v352
    %v729 = vunpack.c.h.b16 %v352
    %v730 = vunpack.c.l.b16 %v353
    %v731 = vunpack.c.h.b16 %v353
    %v732 = vunpack.c.l.b16 %v354
    %v733 = vunpack.c.h.b16 %v354
    %v734 = vunpack.c.l.b16 %v355
    %v735 = vunpack.c.h.b16 %v355
    %v736 = vunpack.c.l.b16 %v356
    %v737 = vunpack.c.h.b16 %v356
    %v738 = vunpack.c.l.b16 %v357
    %v739 = vunpack.c.h.b16 %v357
    %v740 = vunpack.c.l.b16 %v358
    %v741 = vunpack.c.h.b16 %v358
    %v742 = vunpack.c.l.b16 %v359
    %v743 = vunpack.c.h.b16 %v359
    %v744 = vunpack.c.l.b16 %v360
    %v745 = vunpack.c.h.b16 %v360
    %v746 = vunpack.c.l.b16 %v361
    %v747 = vunpack.c.h.b16 %v361
    %v748 = vunpack.c.l.b16 %v362
    %v749 = vunpack.c.h.b16 %v362
    %v750 = vunpack.c.l.b16 %v363
    %v751 = vunpack.c.h.b16 %v363
    %v752 = vunpack.c.l.b16 %v364
    %v753 = vunpack.c.h.b16 %v364
    %v754 = vunpack.c.l.b16 %v365
    %v755 = vunpack.c.h.b16 %v365
    %v756 = vunpack.c.l.b16 %v366
    %v757 = vunpack.c.h.b16 %v366
    %v758 = vunpack.c.l.b16 %v367
    %v759 = vunpack.c.h.b16 %v367
    %v760 = vunpack.c.l.b16 %v368
    %v761 = vunpack.c.h.b16 %v368
    %v762 = vunpack.c.l.b16 %v369
    %v763 = vunpack.c.h.b16 %v369
    %v764 = vunpack.c.l.b16 %v370
    %v765 = vunpack.c.h.b16 %v370
    %v766 = vunpack.c.l.b16 %v371
    %v767 = vunpack.c.h.b16 %v371
    %v768 = vunpack.c.l.b16 %v372
    %v769 = vunpack.c.h.b16 %v372
    %v770 = vunpack.c.l.b16 %v373
    %v771 = vunpack.c.h.b16 %v373
    %v772 = vunpack.c.l.b16 %v374
    %v773 = vunpack.c.h.b16 %v374
    %v774 = vunpack.c.l.b16 %v375
    %v775 = vunpack.c.h.b16 %v375
    %v776 = vunpack.c.l.b16 %v376
    %v777 = vunpack.c.h.b16 %v376
    %v778 = vunpack.c.l.b16 %v377
    %v779 = vunpack.c.h.b16 %v377
    %v780 = vunpack.c.l.b16 %v378
    %v781 = vunpack.c.h.b16 %v378
    %v782 = vunpack.c.l.b16 %v379
    %v783 = vunpack.c.h.b16 %v379
    %v784 = vunpack.c.l.b16 %v380
    %v785 = vunpack.c.h.b16 %v380
    %v786 = vunpack.c.l.b16 %v381
    %v787 = vunpack.c.h.b16 %v381
    %v788 = vpack.c.b16 %v536, %v532
    %v789 = vpack.c.b16 %v537, %v533
    %v790 = vpack.c.b16 %v538, %v534
    %v791 = vpack.c.b16 %v539, %v535
    %v792 = vpack.c.b16 %v544, %v540
    %v793 = vpack.c.b16 %v545, %v541
    %v794 = vpack.c.b16 %v546, %v542
    %v795 = vpack.c.b16 %v547, %v543
    %v796 = vpack.c.b16 %v552, %v548
    %v797 = vpack.c.b16 %v553, %v549
    %v798 = vpack.c.b16 %v554, %v550
    %v799 = vpack.c.b16 %v555, %v551
    %v800 = vpack.c.b16 %v560, %v556
    %v801 = vpack.c.b16 %v561, %v557
    %v802 = vpack.c.b16 %v562, %v558
    %v803 = vpack.c.b16 %v563, %v559
    %v804 = vpack.c.b16 %v568, %v564
    %v805 = vpack.c.b16 %v569, %v565
    %v806 = vpack.c.b16 %v570, %v566
    %v807 = vpack.c.b16 %v571, %v567
    %v808 = vpack.c.b16 %v576, %v572
    %v809 = vpack.c.b16 %v577, %v573
    %v810 = vpack.c.b16 %v578, %v574
    %v811 = vpack.c.b16 %v579, %v575
    %v812 = vpack.c.b16 %v584, %v580
    %v813 = vpack.c.b16 %v585, %v581
    %v814 = vpack.c.b16 %v586, %v582
    %v815 = vpack.c.b16 %v587, %v583
    %v816 = vpack.c.b16 %v592, %v588
    %v817 = vpack.c.b16 %v593, %v589
    %v818 = vpack.c.b16 %v594, %v590
    %v819 = vpack.c.b16 %v595, %v591
    %v820 = vpack.c.b16 %v600, %v596
    %v821 = vpack.c.b16 %v601, %v597
    %v822 = vpack.c.b16 %v602, %v598
    %v823 = vpack.c.b16 %v603, %v599
    %v824 = vpack.c.b16 %v608, %v604
    %v825 = vpack.c.b16 %v609, %v605
    %v826 = vpack.c.b16 %v610, %v606
    %v827 = vpack.c.b16 %v611, %v607
    %v828 = vpack.c.b16 %v616, %v612
    %v829 = vpack.c.b16 %v617, %v613
    %v830 = vpack.c.b16 %v618, %v614
    %v831 = vpack.c.b16 %v619, %v615
    %v832 = vpack.c.b16 %v624, %v620
    %v833 = vpack.c.b16 %v625, %v621
    %v834 = vpack.c.b16 %v626, %v622
    %v835 = vpack.c.b16 %v627, %v623
    %v836 = vpack.c.b16 %v632, %v628
    %v837 = vpack.c.b16 %v633, %v629
    %v838 = vpack.c.b16 %v634, %v630
    %v839 = vpack.c.b16 %v635, %v631
    %v840 = vpack.c.b16 %v640, %v636
    %v841 = vpack.c.b16 %v641, %v637
    %v842 = vpack.c.b16 %v642, %v638
    %v843 = vpack.c.b16 %v643, %v639
    %v844 = vpack.c.b16 %v648, %v644
    %v845 = vpack.c.b16 %v649, %v645
    %v846 = vpack.c.b16 %v650, %v646
    %v847 = vpack.c.b16 %v651, %v647
    %v848 = vpack.c.b16 %v656, %v652
    %v849 = vpack.c.b16 %v657, %v653
    %v850 = vpack.c.b16 %v658, %v654
    %v851 = vpack.c.b16 %v659, %v655
    %v852 = vpack.c.b16 %v664, %v660
    %v853 = vpack.c.b16 %v665, %v661
    %v854 = vpack.c.b16 %v666, %v662
    %v855 = vpack.c.b16 %v667, %v663
    %v856 = vpack.c.b16 %v672, %v668
    %v857 = vpack.c.b16 %v673, %v669
    %v858 = vpack.c.b16 %v674, %v670
    %v859 = vpack.c.b16 %v675, %v671
    %v860 = vpack.c.b16 %v680, %v676
    %v861 = vpack.c.b16 %v681, %v677
    %v862 = vpack.c.b16 %v682, %v678
    %v863 = vpack.c.b16 %v683, %v679
    %v864 = vpack.c.b16 %v688, %v684
    %v865 = vpack.c.b16 %v689, %v685
    %v866 = vpack.c.b16 %v690, %v686
    %v867 = vpack.c.b16 %v691, %v687
    %v868 = vpack.c.b16 %v696, %v692
    %v869 = vpack.c.b16 %v697, %v693
    %v870 = vpack.c.b16 %v698, %v694
    %v871 = vpack.c.b16 %v699, %v695
    %v872 = vpack.c.b16 %v704, %v700
    %v873 = vpack.c.b16 %v705, %v701
    %v874 = vpack.c.b16 %v706, %v702
    %v875 = vpack.c.b16 %v707, %v703
    %v876 = vpack.c.b16 %v712, %v708
    %v877 = vpack.c.b16 %v713, %v709
    %v878 = vpack.c.b16 %v714, %v710
    %v879 = vpack.c.b16 %v715, %v711
    %v880 = vpack.c.b16 %v720, %v716
    %v881 = vpack.c.b16 %v721, %v717
    %v882 = vpack.c.b16 %v722, %v718
    %v883 = vpack.c.b16 %v723, %v719
    %v884 = vpack.c.b16 %v728, %v724
    %v885 = vpack.c.b16 %v729, %v725
    %v886 = vpack.c.b16 %v730, %v726
    %v887 = vpack.c.b16 %v731, %v727
    %v888 = vpack.c.b16 %v736, %v732
    %v889 = vpack.c.b16 %v737, %v733
    %v890 = vpack.c.b16 %v738, %v734
    %v891 = vpack.c.b16 %v739, %v735
    %v892 = vpack.c.b16 %v744, %v740
    %v893 = vpack.c.b16 %v745, %v741
    %v894 = vpack.c.b16 %v746, %v742
    %v895 = vpack.c.b16 %v747, %v743
    %v896 = vpack.c.b16 %v752, %v748
    %v897 = vpack.c.b16 %v753, %v749
    %v898 = vpack.c.b16 %v754, %v750
    %v899 = vpack.c.b16 %v755, %v751
    %v900 = vpack.c.b16 %v760, %v756
    %v901 = vpack.c.b16 %v761, %v757
    %v902 = vpack.c.b16 %v762, %v758
    %v903 = vpack.c.b16 %v763, %v759
    %v904 = vpack.c.b16 %v768, %v764
    %v905 = vpack.c.b16 %v769, %v765
    %v906 = vpack.c.b16 %v770, %v766
    %v907 = vpack.c.b16 %v771, %v767
    %v908 = vpack.c.b16 %v776, %v772
    %v909 = vpack.c.b16 %v777, %v773
    %v910 = vpack.c.b16 %v778, %v774
    %v911 = vpack.c.b16 %v779, %v775
    %v912 = vpack.c.b16 %v784, %v780
    %v913 = vpack.c.b16 %v785, %v781
    %v914 = vpack.c.b16 %v786, %v782
    %v915 = vpack.c.b16 %v787, %v783
    %1044 = vmatprep.subr.bf16.mxu0 %v817
    %1045 = vmatpush1.bf16.msra.mxu0 %v816
    %1046 = vmatprep.subr.bf16.mxu0 %v813
    %1047 = vmatpush1.bf16.msra.mxu0 %v812
    %1048 = vmatprep.subr.bf16.mxu0 %v809
    %1049 = vmatpush1.bf16.msra.mxu0 %v808
    %1050 = vmatprep.subr.bf16.mxu0 %v805
    %1051 = vmatpush1.bf16.msra.mxu0 %v804
    %1052 = vmatprep.subr.bf16.mxu0 %v801
    %1053 = vmatpush1.bf16.msra.mxu0 %v800
    %1054 = vmatprep.subr.bf16.mxu0 %v797
    %1055 = vmatpush1.bf16.msra.mxu0 %v796
    %1056 = vmatprep.subr.bf16.mxu0 %v793
    %1057 = vmatpush1.bf16.msra.mxu0 %v792
    %1058 = vmatprep.subr.bf16.mxu0 %v789
    %1059 = vmatpush1.bf16.msra.mxu0 %v788
    %1060 = vmatprep.subr.bf16.mxu0 %v849
    %1061 = vmatpush2.bf16.msra.mxu0 %v848
    %1062 = vmatprep.subr.bf16.mxu0 %v845
    %1063 = vmatpush2.bf16.msra.mxu0 %v844
    %1064 = vmatprep.subr.bf16.mxu0 %v841
    %1065 = vmatpush2.bf16.msra.mxu0 %v840
    %1066 = vmatprep.subr.bf16.mxu0 %v837
    %1067 = vmatpush2.bf16.msra.mxu0 %v836
    %1068 = vmatprep.subr.bf16.mxu0 %v833
    %1069 = vmatpush2.bf16.msra.mxu0 %v832
    %1070 = vmatprep.subr.bf16.mxu0 %v829
    %1071 = vmatpush2.bf16.msra.mxu0 %v828
    %1072 = vmatprep.subr.bf16.mxu0 %v825
    %1073 = vmatpush2.bf16.msra.mxu0 %v824
    %1074 = vmatprep.subr.bf16.mxu0 %v821
    %1075 = vmatpush2.bf16.msra.mxu0 %v820
    %1076 = vmatprep.mubr.bf16.mxu0 %v251
    %1077 = vmatmul.mubr.bf16.gmra.mxu0 %v250
    %v1078 = vpop.f32.mrf.mxu0
    %v1079 = vadd.f32 %v387, %v1078
    %v1080 = vpop.f32.mrf.mxu0
    %v1081 = vadd.f32 %v391, %v1080
    %v1082 = vpop.f32.mrf.mxu0
    %v1083 = vpop.f32.mrf.mxu0
    %1084 = vdwg.mxu0
    %1085 = vmatprep.subr.bf16.mxu0 %v881
    %1086 = vmatpush1.bf16.msra.mxu0 %v880
    %1087 = vmatprep.subr.bf16.mxu0 %v877
    %1088 = vmatpush1.bf16.msra.mxu0 %v876
    %1089 = vmatprep.subr.bf16.mxu0 %v873
    %1090 = vmatpush1.bf16.msra.mxu0 %v872
    %1091 = vmatprep.subr.bf16.mxu0 %v869
    %1092 = vmatpush1.bf16.msra.mxu0 %v868
    %1093 = vmatprep.subr.bf16.mxu0 %v865
    %1094 = vmatpush1.bf16.msra.mxu0 %v864
    %1095 = vmatprep.subr.bf16.mxu0 %v861
    %1096 = vmatpush1.bf16.msra.mxu0 %v860
    %1097 = vmatprep.subr.bf16.mxu0 %v857
    %1098 = vmatpush1.bf16.msra.mxu0 %v856
    %1099 = vmatprep.subr.bf16.mxu0 %v853
    %1100 = vmatpush1.bf16.msra.mxu0 %v852
    %1101 = vmatprep.subr.bf16.mxu0 %v913
    %1102 = vmatpush2.bf16.msra.mxu0 %v912
    %1103 = vmatprep.subr.bf16.mxu0 %v909
    %1104 = vmatpush2.bf16.msra.mxu0 %v908
    %1105 = vmatprep.subr.bf16.mxu0 %v905
    %1106 = vmatpush2.bf16.msra.mxu0 %v904
    %1107 = vmatprep.subr.bf16.mxu0 %v901
    %1108 = vmatpush2.bf16.msra.mxu0 %v900
    %1109 = vmatprep.subr.bf16.mxu0 %v897
    %1110 = vmatpush2.bf16.msra.mxu0 %v896
    %1111 = vmatprep.subr.bf16.mxu0 %v893
    %1112 = vmatpush2.bf16.msra.mxu0 %v892
    %1113 = vmatprep.subr.bf16.mxu0 %v889
    %1114 = vmatpush2.bf16.msra.mxu0 %v888
    %1115 = vmatprep.subr.bf16.mxu0 %v885
    %1116 = vmatpush2.bf16.msra.mxu0 %v884
    %1117 = vmatprep.mubr.bf16.mxu0 %v253
    %1118 = vmatmul.mubr.bf16.gmra.mxu0 %v252
    %v1119 = vpop.f32.mrf.mxu0
    %v1120 = vadd.f32 %v1079, %v1119
    %v1121 = vpop.f32.mrf.mxu0
    %v1122 = vadd.f32 %v1081, %v1121
    %v1123 = vpop.f32.mrf.mxu0
    %v1124 = vpop.f32.mrf.mxu0
    %1125 = vdwg.mxu0
    %1126 = vmatprep.subr.bf16.mxu0 %v819
    %1127 = vmatpush1.bf16.msra.mxu0 %v818
    %1128 = vmatprep.subr.bf16.mxu0 %v815
    %1129 = vmatpush1.bf16.msra.mxu0 %v814
    %1130 = vmatprep.subr.bf16.mxu0 %v811
    %1131 = vmatpush1.bf16.msra.mxu0 %v810
    %1132 = vmatprep.subr.bf16.mxu0 %v807
    %1133 = vmatpush1.bf16.msra.mxu0 %v806
    %1134 = vmatprep.subr.bf16.mxu0 %v803
    %1135 = vmatpush1.bf16.msra.mxu0 %v802
    %1136 = vmatprep.subr.bf16.mxu0 %v799
    %1137 = vmatpush1.bf16.msra.mxu0 %v798
    %1138 = vmatprep.subr.bf16.mxu0 %v795
    %1139 = vmatpush1.bf16.msra.mxu0 %v794
    %1140 = vmatprep.subr.bf16.mxu0 %v791
    %1141 = vmatpush1.bf16.msra.mxu0 %v790
    %1142 = vmatprep.subr.bf16.mxu0 %v851
    %1143 = vmatpush2.bf16.msra.mxu0 %v850
    %1144 = vmatprep.subr.bf16.mxu0 %v847
    %1145 = vmatpush2.bf16.msra.mxu0 %v846
    %1146 = vmatprep.subr.bf16.mxu0 %v843
    %1147 = vmatpush2.bf16.msra.mxu0 %v842
    %1148 = vmatprep.subr.bf16.mxu0 %v839
    %1149 = vmatpush2.bf16.msra.mxu0 %v838
    %1150 = vmatprep.subr.bf16.mxu0 %v835
    %1151 = vmatpush2.bf16.msra.mxu0 %v834
    %1152 = vmatprep.subr.bf16.mxu0 %v831
    %1153 = vmatpush2.bf16.msra.mxu0 %v830
    %1154 = vmatprep.subr.bf16.mxu0 %v827
    %1155 = vmatpush2.bf16.msra.mxu0 %v826
    %1156 = vmatprep.subr.bf16.mxu0 %v823
    %1157 = vmatpush2.bf16.msra.mxu0 %v822
    %1158 = vmatprep.mubr.bf16.mxu0 %v251
    %1159 = vmatmul.mubr.bf16.gmra.mxu0 %v250
    %v1160 = vpop.f32.mrf.mxu0
    %v1161 = vadd.f32 %v395, %v1160
    %v1162 = vpop.f32.mrf.mxu0
    %v1163 = vadd.f32 %v399, %v1162
    %v1164 = vpop.f32.mrf.mxu0
    %v1165 = vpop.f32.mrf.mxu0
    %1166 = vdwg.mxu0
    %1167 = vmatprep.subr.bf16.mxu0 %v883
    %1168 = vmatpush1.bf16.msra.mxu0 %v882
    %1169 = vmatprep.subr.bf16.mxu0 %v879
    %1170 = vmatpush1.bf16.msra.mxu0 %v878
    %1171 = vmatprep.subr.bf16.mxu0 %v875
    %1172 = vmatpush1.bf16.msra.mxu0 %v874
    %1173 = vmatprep.subr.bf16.mxu0 %v871
    %1174 = vmatpush1.bf16.msra.mxu0 %v870
    %1175 = vmatprep.subr.bf16.mxu0 %v867
    %1176 = vmatpush1.bf16.msra.mxu0 %v866
    %1177 = vmatprep.subr.bf16.mxu0 %v863
    %1178 = vmatpush1.bf16.msra.mxu0 %v862
    %1179 = vmatprep.subr.bf16.mxu0 %v859
    %1180 = vmatpush1.bf16.msra.mxu0 %v858
    %1181 = vmatprep.subr.bf16.mxu0 %v855
    %1182 = vmatpush1.bf16.msra.mxu0 %v854
    %1183 = vmatprep.subr.bf16.mxu0 %v915
    %1184 = vmatpush2.bf16.msra.mxu0 %v914
    %1185 = vmatprep.subr.bf16.mxu0 %v911
    %1186 = vmatpush2.bf16.msra.mxu0 %v910
    %1187 = vmatprep.subr.bf16.mxu0 %v907
    %1188 = vmatpush2.bf16.msra.mxu0 %v906
    %1189 = vmatprep.subr.bf16.mxu0 %v903
    %1190 = vmatpush2.bf16.msra.mxu0 %v902
    %1191 = vmatprep.subr.bf16.mxu0 %v899
    %1192 = vmatpush2.bf16.msra.mxu0 %v898
    %1193 = vmatprep.subr.bf16.mxu0 %v895
    %1194 = vmatpush2.bf16.msra.mxu0 %v894
    %1195 = vmatprep.subr.bf16.mxu0 %v891
    %1196 = vmatpush2.bf16.msra.mxu0 %v890
    %1197 = vmatprep.subr.bf16.mxu0 %v887
    %1198 = vmatpush2.bf16.msra.mxu0 %v886
    %1199 = vmatprep.mubr.bf16.mxu0 %v253
    %1200 = vmatmul.mubr.bf16.gmra.mxu0 %v252
    %v1201 = vpop.f32.mrf.mxu0
    %v1202 = vadd.f32 %v1161, %v1201
    %v1203 = vpop.f32.mrf.mxu0
    %v1204 = vadd.f32 %v1163, %v1203
    %v1205 = vpop.f32.mrf.mxu0
    %v1206 = vpop.f32.mrf.mxu0
    %1207 = vdwg.mxu0
    %v1208 = vmax.f32 %v1120, 0.0
    %v1209 = vmax.f32 %v1122, 0.0
    %v1210 = vmax.f32 %v1202, 0.0
    %v1211 = vmax.f32 %v1204, 0.0
    %v1212 = vpack.c.bf16 %v1208, %v1208
    %v1213 = vpack.c.bf16 %v1209, %v1209
    %v1214 = vpack.c.bf16 %v1210, %v1210
    %v1215 = vpack.c.bf16 %v1211, %v1211
    %v1216 = vld [vmem:[#allocation4] sm:$0xf]
    %v1217 = vld [vmem:[#allocation4 + $0x4] sm:$0xf]
    %v1218 = vld [vmem:[#allocation4 + $0x8] sm:$0xf]
    %v1219 = vld [vmem:[#allocation4 + $0xc] sm:$0xf]
    %v1220 = vld [vmem:[#allocation4 + $0x10] sm:$0xf]
    %v1221 = vld [vmem:[#allocation4 + $0x14] sm:$0xf]
    %v1222 = vld [vmem:[#allocation4 + $0x18] sm:$0xf]
    %v1223 = vld [vmem:[#allocation4 + $0x1c] sm:$0xf]
    %v1224 = vld [vmem:[#allocation4 + $0x20] sm:$0xf]
    %v1225 = vld [vmem:[#allocation4 + $0x24] sm:$0xf]
    %v1226 = vld [vmem:[#allocation4 + $0x28] sm:$0xf]
    %v1227 = vld [vmem:[#allocation4 + $0x2c] sm:$0xf]
    %v1228 = vld [vmem:[#allocation4 + $0x30] sm:$0xf]
    %v1229 = vld [vmem:[#allocation4 + $0x34] sm:$0xf]
    %v1230 = vld [vmem:[#allocation4 + $0x38] sm:$0xf]
    %v1231 = vld [vmem:[#allocation4 + $0x3c] sm:$0xf]
    %v1232 = vld [vmem:[#allocation4 + $0x40] sm:$0xf]
    %v1233 = vld [vmem:[#allocation4 + $0x44] sm:$0xf]
    %v1234 = vld [vmem:[#allocation4 + $0x48] sm:$0xf]
    %v1235 = vld [vmem:[#allocation4 + $0x4c] sm:$0xf]
    %v1236 = vld [vmem:[#allocation4 + $0x50] sm:$0xf]
    %v1237 = vld [vmem:[#allocation4 + $0x54] sm:$0xf]
    %v1238 = vld [vmem:[#allocation4 + $0x58] sm:$0xf]
    %v1239 = vld [vmem:[#allocation4 + $0x5c] sm:$0xf]
    %v1240 = vld [vmem:[#allocation4 + $0x60] sm:$0xf]
    %v1241 = vld [vmem:[#allocation4 + $0x64] sm:$0xf]
    %v1242 = vld [vmem:[#allocation4 + $0x68] sm:$0xf]
    %v1243 = vld [vmem:[#allocation4 + $0x6c] sm:$0xf]
    %v1244 = vld [vmem:[#allocation4 + $0x70] sm:$0xf]
    %v1245 = vld [vmem:[#allocation4 + $0x74] sm:$0xf]
    %v1246 = vld [vmem:[#allocation4 + $0x78] sm:$0xf]
    %v1247 = vld [vmem:[#allocation4 + $0x7c] sm:$0xf]
    %v1248 = vld [vmem:[#allocation4 + $0x80] sm:$0xf]
    %v1249 = vld [vmem:[#allocation4 + $0x84] sm:$0xf]
    %v1250 = vld [vmem:[#allocation4 + $0x88] sm:$0xf]
    %v1251 = vld [vmem:[#allocation4 + $0x8c] sm:$0xf]
    %v1252 = vld [vmem:[#allocation4 + $0x90] sm:$0xf]
    %v1253 = vld [vmem:[#allocation4 + $0x94] sm:$0xf]
    %v1254 = vld [vmem:[#allocation4 + $0x98] sm:$0xf]
    %v1255 = vld [vmem:[#allocation4 + $0x9c] sm:$0xf]
    %v1256 = vld [vmem:[#allocation4 + $0xa0] sm:$0xf]
    %v1257 = vld [vmem:[#allocation4 + $0xa4] sm:$0xf]
    %v1258 = vld [vmem:[#allocation4 + $0xa8] sm:$0xf]
    %v1259 = vld [vmem:[#allocation4 + $0xac] sm:$0xf]
    %v1260 = vld [vmem:[#allocation4 + $0xb0] sm:$0xf]
    %v1261 = vld [vmem:[#allocation4 + $0xb4] sm:$0xf]
    %v1262 = vld [vmem:[#allocation4 + $0xb8] sm:$0xf]
    %v1263 = vld [vmem:[#allocation4 + $0xbc] sm:$0xf]
    %v1264 = vld [vmem:[#allocation4 + $0xc0] sm:$0xf]
    %v1265 = vld [vmem:[#allocation4 + $0xc4] sm:$0xf]
    %v1266 = vld [vmem:[#allocation4 + $0xc8] sm:$0xf]
    %v1267 = vld [vmem:[#allocation4 + $0xcc] sm:$0xf]
    %v1268 = vld [vmem:[#allocation4 + $0xd0] sm:$0xf]
    %v1269 = vld [vmem:[#allocation4 + $0xd4] sm:$0xf]
    %v1270 = vld [vmem:[#allocation4 + $0xd8] sm:$0xf]
    %v1271 = vld [vmem:[#allocation4 + $0xdc] sm:$0xf]
    %v1272 = vld [vmem:[#allocation4 + $0xe0] sm:$0xf]
    %v1273 = vld [vmem:[#allocation4 + $0xe4] sm:$0xf]
    %v1274 = vld [vmem:[#allocation4 + $0xe8] sm:$0xf]
    %v1275 = vld [vmem:[#allocation4 + $0xec] sm:$0xf]
    %v1276 = vld [vmem:[#allocation4 + $0xf0] sm:$0xf]
    %v1277 = vld [vmem:[#allocation4 + $0xf4] sm:$0xf]
    %v1278 = vld [vmem:[#allocation4 + $0xf8] sm:$0xf]
    %v1279 = vld [vmem:[#allocation4 + $0xfc] sm:$0xf]
    %v1280 = vld [vmem:[%s6] sm:$0x1]
    %v1282 = vlaneseq
    %v1283 = vshrl.u32 %v1282, 7
    %v1284 = vsub.s32 0, %v1283
    %v1285 = vrot.slane %v1280, %v1284
    %v1351 = vunpack.c.l.b16 %v1216
    %v1352 = vunpack.c.l.b16 %v1217
    %v1353 = vunpack.c.l.b16 %v1218
    %v1354 = vunpack.c.l.b16 %v1219
    %v1355 = vunpack.c.l.b16 %v1220
    %v1356 = vunpack.c.l.b16 %v1221
    %v1357 = vunpack.c.l.b16 %v1222
    %v1358 = vunpack.c.l.b16 %v1223
    %v1359 = vunpack.c.l.b16 %v1224
    %v1360 = vunpack.c.l.b16 %v1225
    %v1361 = vunpack.c.l.b16 %v1226
    %v1362 = vunpack.c.l.b16 %v1227
    %v1363 = vunpack.c.l.b16 %v1228
    %v1364 = vunpack.c.l.b16 %v1229
    %v1365 = vunpack.c.l.b16 %v1230
    %v1366 = vunpack.c.l.b16 %v1231
    %v1367 = vunpack.c.l.b16 %v1232
    %v1368 = vunpack.c.l.b16 %v1233
    %v1369 = vunpack.c.l.b16 %v1234
    %v1370 = vunpack.c.l.b16 %v1235
    %v1371 = vunpack.c.l.b16 %v1236
    %v1372 = vunpack.c.l.b16 %v1237
    %v1373 = vunpack.c.l.b16 %v1238
    %v1374 = vunpack.c.l.b16 %v1239
    %v1375 = vunpack.c.l.b16 %v1240
    %v1376 = vunpack.c.l.b16 %v1241
    %v1377 = vunpack.c.l.b16 %v1242
    %v1378 = vunpack.c.l.b16 %v1243
    %v1379 = vunpack.c.l.b16 %v1244
    %v1380 = vunpack.c.l.b16 %v1245
    %v1381 = vunpack.c.l.b16 %v1246
    %v1382 = vunpack.c.l.b16 %v1247
    %v1383 = vunpack.c.l.b16 %v1248
    %v1384 = vunpack.c.l.b16 %v1249
    %v1385 = vunpack.c.l.b16 %v1250
    %v1386 = vunpack.c.l.b16 %v1251
    %v1387 = vunpack.c.l.b16 %v1252
    %v1388 = vunpack.c.l.b16 %v1253
    %v1389 = vunpack.c.l.b16 %v1254
    %v1390 = vunpack.c.l.b16 %v1255
    %v1391 = vunpack.c.l.b16 %v1256
    %v1392 = vunpack.c.l.b16 %v1257
    %v1393 = vunpack.c.l.b16 %v1258
    %v1394 = vunpack.c.l.b16 %v1259
    %v1395 = vunpack.c.l.b16 %v1260
    %v1396 = vunpack.c.l.b16 %v1261
    %v1397 = vunpack.c.l.b16 %v1262
    %v1398 = vunpack.c.l.b16 %v1263
    %v1399 = vunpack.c.l.b16 %v1264
    %v1400 = vunpack.c.l.b16 %v1265
    %v1401 = vunpack.c.l.b16 %v1266
    %v1402 = vunpack.c.l.b16 %v1267
    %v1403 = vunpack.c.l.b16 %v1268
    %v1404 = vunpack.c.l.b16 %v1269
    %v1405 = vunpack.c.l.b16 %v1270
    %v1406 = vunpack.c.l.b16 %v1271
    %v1407 = vunpack.c.l.b16 %v1272
    %v1408 = vunpack.c.l.b16 %v1273
    %v1409 = vunpack.c.l.b16 %v1274
    %v1410 = vunpack.c.l.b16 %v1275
    %v1411 = vunpack.c.l.b16 %v1276
    %v1412 = vunpack.c.l.b16 %v1277
    %v1413 = vunpack.c.l.b16 %v1278
    %v1414 = vunpack.c.l.b16 %v1279
    %v1415 = vpack.c.b16 %v1352, %v1351
    %v1416 = vpack.c.b16 %v1354, %v1353
    %v1417 = vpack.c.b16 %v1356, %v1355
    %v1418 = vpack.c.b16 %v1358, %v1357
    %v1419 = vpack.c.b16 %v1360, %v1359
    %v1420 = vpack.c.b16 %v1362, %v1361
    %v1421 = vpack.c.b16 %v1364, %v1363
    %v1422 = vpack.c.b16 %v1366, %v1365
    %v1423 = vpack.c.b16 %v1368, %v1367
    %v1424 = vpack.c.b16 %v1370, %v1369
    %v1425 = vpack.c.b16 %v1372, %v1371
    %v1426 = vpack.c.b16 %v1374, %v1373
    %v1427 = vpack.c.b16 %v1376, %v1375
    %v1428 = vpack.c.b16 %v1378, %v1377
    %v1429 = vpack.c.b16 %v1380, %v1379
    %v1430 = vpack.c.b16 %v1382, %v1381
    %v1431 = vpack.c.b16 %v1384, %v1383
    %v1432 = vpack.c.b16 %v1386, %v1385
    %v1433 = vpack.c.b16 %v1388, %v1387
    %v1434 = vpack.c.b16 %v1390, %v1389
    %v1435 = vpack.c.b16 %v1392, %v1391
    %v1436 = vpack.c.b16 %v1394, %v1393
    %v1437 = vpack.c.b16 %v1396, %v1395
    %v1438 = vpack.c.b16 %v1398, %v1397
    %v1439 = vpack.c.b16 %v1400, %v1399
    %v1440 = vpack.c.b16 %v1402, %v1401
    %v1441 = vpack.c.b16 %v1404, %v1403
    %v1442 = vpack.c.b16 %v1406, %v1405
    %v1443 = vpack.c.b16 %v1408, %v1407
    %v1444 = vpack.c.b16 %v1410, %v1409
    %v1445 = vpack.c.b16 %v1412, %v1411
    %v1446 = vpack.c.b16 %v1414, %v1413
    %1479 = vmatprep.subr.bf16.mxu0 0
    %1480 = vmatpush1.bf16.msra.mxu0 %v1422
    %1481 = vmatprep.subr.bf16.mxu0 0
    %1482 = vmatpush1.bf16.msra.mxu0 %v1421
    %1483 = vmatprep.subr.bf16.mxu0 0
    %1484 = vmatpush1.bf16.msra.mxu0 %v1420
    %1485 = vmatprep.subr.bf16.mxu0 0
    %1486 = vmatpush1.bf16.msra.mxu0 %v1419
    %1487 = vmatprep.subr.bf16.mxu0 0
    %1488 = vmatpush1.bf16.msra.mxu0 %v1418
    %1489 = vmatprep.subr.bf16.mxu0 0
    %1490 = vmatpush1.bf16.msra.mxu0 %v1417
    %1491 = vmatprep.subr.bf16.mxu0 0
    %1492 = vmatpush1.bf16.msra.mxu0 %v1416
    %1493 = vmatprep.subr.bf16.mxu0 0
    %1494 = vmatpush1.bf16.msra.mxu0 %v1415
    %1495 = vmatprep.subr.bf16.mxu0 0
    %1496 = vmatpush2.bf16.msra.mxu0 %v1430
    %1497 = vmatprep.subr.bf16.mxu0 0
    %1498 = vmatpush2.bf16.msra.mxu0 %v1429
    %1499 = vmatprep.subr.bf16.mxu0 0
    %1500 = vmatpush2.bf16.msra.mxu0 %v1428
    %1501 = vmatprep.subr.bf16.mxu0 0
    %1502 = vmatpush2.bf16.msra.mxu0 %v1427
    %1503 = vmatprep.subr.bf16.mxu0 0
    %1504 = vmatpush2.bf16.msra.mxu0 %v1426
    %1505 = vmatprep.subr.bf16.mxu0 0
    %1506 = vmatpush2.bf16.msra.mxu0 %v1425
    %1507 = vmatprep.subr.bf16.mxu0 0
    %1508 = vmatpush2.bf16.msra.mxu0 %v1424
    %1509 = vmatprep.subr.bf16.mxu0 0
    %1510 = vmatpush2.bf16.msra.mxu0 %v1423
    %1511 = vmatprep.mubr.bf16.mxu0 %v1213
    %1512 = vmatmul.mubr.bf16.gmra.mxu0 %v1212
    %v1513 = vpop.f32.mrf.mxu0
    %v1514 = vadd.f32 %v1285, %v1513
    %v1515 = vpop.f32.mrf.mxu0
    %v1516 = vpop.f32.mrf.mxu0
    %v1517 = vpop.f32.mrf.mxu0
    %1518 = vdwg.mxu0
    %1519 = vmatprep.subr.bf16.mxu0 0
    %1520 = vmatpush1.bf16.msra.mxu0 %v1438
    %1521 = vmatprep.subr.bf16.mxu0 0
    %1522 = vmatpush1.bf16.msra.mxu0 %v1437
    %1523 = vmatprep.subr.bf16.mxu0 0
    %1524 = vmatpush1.bf16.msra.mxu0 %v1436
    %1525 = vmatprep.subr.bf16.mxu0 0
    %1526 = vmatpush1.bf16.msra.mxu0 %v1435
    %1527 = vmatprep.subr.bf16.mxu0 0
    %1528 = vmatpush1.bf16.msra.mxu0 %v1434
    %1529 = vmatprep.subr.bf16.mxu0 0
    %1530 = vmatpush1.bf16.msra.mxu0 %v1433
    %1531 = vmatprep.subr.bf16.mxu0 0
    %1532 = vmatpush1.bf16.msra.mxu0 %v1432
    %1533 = vmatprep.subr.bf16.mxu0 0
    %1534 = vmatpush1.bf16.msra.mxu0 %v1431
    %1535 = vmatprep.subr.bf16.mxu0 0
    %1536 = vmatpush2.bf16.msra.mxu0 %v1446
    %1537 = vmatprep.subr.bf16.mxu0 0
    %1538 = vmatpush2.bf16.msra.mxu0 %v1445
    %1539 = vmatprep.subr.bf16.mxu0 0
    %1540 = vmatpush2.bf16.msra.mxu0 %v1444
    %1541 = vmatprep.subr.bf16.mxu0 0
    %1542 = vmatpush2.bf16.msra.mxu0 %v1443
    %1543 = vmatprep.subr.bf16.mxu0 0
    %1544 = vmatpush2.bf16.msra.mxu0 %v1442
    %1545 = vmatprep.subr.bf16.mxu0 0
    %1546 = vmatpush2.bf16.msra.mxu0 %v1441
    %1547 = vmatprep.subr.bf16.mxu0 0
    %1548 = vmatpush2.bf16.msra.mxu0 %v1440
    %1549 = vmatprep.subr.bf16.mxu0 0
    %1550 = vmatpush2.bf16.msra.mxu0 %v1439
    %1551 = vmatprep.mubr.bf16.mxu0 %v1215
    %1552 = vmatmul.mubr.bf16.gmra.mxu0 %v1214
    %v1553 = vpop.f32.mrf.mxu0
    %v1554 = vadd.f32 %v1514, %v1553
    %v1555 = vpop.f32.mrf.mxu0
    %v1556 = vpop.f32.mrf.mxu0
    %v1557 = vpop.f32.mrf.mxu0
    %1558 = vdwg.mxu0
    %v1559 = vpack.c.bf16 %v1554, %v1554
    %1560 = vst [vmem:[%s7] sm:$0xf] %v1559
    // Predicated region
    $region38: #{fir_model_forward.1} parent=1 // pred_check
      _
    $region39: #{fir_model_forward.1} parent=1 // pred_check_branch
      %1562 = sbr.rel (0) target = $region41
    $region40: #{fir_model_forward.1} parent=1 // pred_region
      _
    $region41: #{fir_model_forward.1} parent=1 // pred_fallthru
      _
    // Predicated region
    $region42: #{fir_model_forward.1} parent=1 // pred_check
      _
    $region43: #{fir_model_forward.1} parent=1 // pred_check_branch
      %1564 = sbr.rel (0) target = $region45
    $region44: #{fir_model_forward.1} parent=1 // pred_region
      _
    $region45: #{fir_model_forward.1} parent=1 // pred_fallthru
      _
    %1565 = vsyncpa [#allocation3], 1
    %1566 = vsyncpa [#allocation5], 1

</llo_original>
